<compile_context>
chip_gen: v5e
topology: v5e:2x2
jax: 0.10.0
libtpu: 0.0.40
codegen_flags: <defaults>
</compile_context>

<pallas_src>
import math

import jax
import jax.numpy as jnp
from jax import lax
from jax.experimental import pallas as pl
from jax.experimental.pallas import tpu as pltpu


# --------------------------------------------------------------------------- #
# Helpers
# --------------------------------------------------------------------------- #
def _pick_tile(n, target, itemsize=4):
    """Largest tile <= target that divides n and is sublane-aligned.

    Prefers multiples of 16 (bf16 packing) then 8 (f32 sublanes); falls back to
    the full extent (always a legal block shape) instead of an arbitrary divisor,
    so BlockSpecs never violate the (8, 128) rule or force masked partial stores.
    """
    if n <= target:
        return n
    aligns = (16, 8) if itemsize < 4 else (8,)
    for a in aligns:
        for t in range(min(target, n), a - 1, -1):
            if t % a == 0 and n % t == 0:
                return t
    return n


def _physical_vmem_bytes():
    try:
        return int(pltpu.get_tpu_info().vmem_capacity_bytes)
    except Exception:
        return 128 << 20  # conservative default (v5e/v6e physical VMEM)


def _vmem_limit_bytes(need_bytes):
    """Per-generation VMEM limit: honest need + headroom, never clamped below it."""
    need = int(need_bytes) + (4 << 20)          # headroom for compiler temporaries
    cap = _physical_vmem_bytes()                # 128 MiB v5e/v6e, 64 MiB/TC v7x
    soft = (3 * cap) // 4                       # leave room for runtime allocations
    # Use up to ~3/4 of physical VMEM, but if the kernel genuinely needs more,
    # request it (the wrapper should shrink tiles / add K tiling instead of us
    # silently starving the kernel).
    return max(min(max(need, 32 << 20), soft), need)


_SINGLE_BUFFER_SUPPORTED = None


def _supports_single_buffering():
    """Probe whether this Pallas build honors pipeline_mode=pl.Buffered(1)."""
    global _SINGLE_BUFFER_SUPPORTED
    if _SINGLE_BUFFER_SUPPORTED is None:
        try:
            def _copy_kernel(x_ref, o_ref):
                o_ref[...] = x_ref[...]

            x = jnp.arange(8 * 128, dtype=jnp.float32).reshape(8, 128)
            y = pl.pallas_call(
                _copy_kernel,
                out_shape=jax.ShapeDtypeStruct((8, 128), jnp.float32),
                grid=(1,),
                in_specs=[pl.BlockSpec((8, 128), lambda i: (0, 0),
                                       pipeline_mode=pl.Buffered(1))],
                out_specs=pl.BlockSpec((8, 128), lambda i: (0, 0)),
            )(x)
            _SINGLE_BUFFER_SUPPORTED = bool(
                jnp.array_equal(jax.block_until_ready(y), x))
        except Exception:
            _SINGLE_BUFFER_SUPPORTED = False
    return _SINGLE_BUFFER_SUPPORTED


def _resident_spec(block_shape, index_map):
    """BlockSpec for grid-invariant blocks: single-buffered when supported."""
    if _supports_single_buffering():
        return pl.BlockSpec(block_shape, index_map, pipeline_mode=pl.Buffered(1))
    return pl.BlockSpec(block_shape, index_map)


# --------------------------------------------------------------------------- #
# Fused projection + attention kernel
# --------------------------------------------------------------------------- #
def _fused_attention_kernel(x_ref, wq_ref, wk_ref, wv_ref, bq_ref, bk_ref, bv_ref,
                            o_ref, k_scr, v_scr):
    """One (batch, query-tile) step: project Q tile, attend against K/V scratch.

    K/V for the whole batch sequence are projected once per batch (qi == 0, the
    sequential 'arbitrary' grid axis) into single-copy VMEM scratch.
    """
    qi = pl.program_id(1)
    tq = o_ref.shape[0]

    @pl.when(qi == 0)
    def _():
        x_all = x_ref[...]                                              # (S, H)
        k = jnp.dot(x_all, wk_ref[...], preferred_element_type=jnp.float32)
        k_scr[...] = (k + bk_ref[...].astype(jnp.float32)).astype(k_scr.dtype)
        v = jnp.dot(x_all, wv_ref[...], preferred_element_type=jnp.float32)
        v_scr[...] = (v + bv_ref[...].astype(jnp.float32)).astype(v_scr.dtype)

    # Q projection for this query tile; 1/sqrt(H) is already folded into Wq/bq.
    start = pl.multiple_of(qi * tq, tq)
    x_q = x_ref[pl.ds(start, tq), :]                                    # (TQ, H)
    q = jnp.dot(x_q, wq_ref[...], preferred_element_type=jnp.float32)
    q = (q + bq_ref[...].astype(jnp.float32)).astype(k_scr.dtype)       # bf16 MXU path when bf16

    # (TQ, S) = Q @ K^T with no materialized transpose: contract the last dims.
    score = lax.dot_general(q, k_scr[...], (((1,), (1,)), ((), ())),
                            preferred_element_type=jnp.float32)

    # Numerically stable softmax over the key axis (exact divide, f32).
    m = jnp.max(score, axis=-1, keepdims=True)
    e = jnp.exp(score - m)
    p = e / jnp.sum(e, axis=-1, keepdims=True)

    out = jnp.dot(p.astype(v_scr.dtype), v_scr[...],
                  preferred_element_type=jnp.float32)
    o_ref[...] = out.astype(o_ref.dtype)

    # TODO(synk): for very long S (v7x, S >~ 8-16K) add a key-axis grid dimension
    #             with online softmax (flash style: f32 m/l/acc scratch, pl.when
    #             init/finalize) so K/V scratch and the (TQ, S) f32 temporaries
    #             stay bounded at O(TQ*TK).
    # TODO(synk): tile the projections over H / the output axis once 3*H^2*itemsize
    #             no longer fits comfortably in VMEM (H >~ 2-4K).


def self_attention(x, wq, bq, wk, bk, wv, bv, *, q_tile=256):
    """x: (B, S, H).  wq/wk/wv: (H, H) in 'x @ W' orientation.  b*: (1, H).

    Eval-mode forward of the PyTorch Self_Attention module.  Pass bf16 inputs to
    get the bf16 MXU path (all matmuls still accumulate in f32).  In production
    H should be a multiple of 128 (pad if needed) so stores stay lane-dense.
    Default q_tile=256 keeps the f32 (TQ, S) softmax temporaries modest (v5e).
    """
    B, S, H = x.shape
    dtype = x.dtype
    itemsize = jnp.dtype(dtype).itemsize

    # Fold the 1/sqrt(hidden_dim) score scale into the Q projection (one-time op).
    scale = 1.0 / math.sqrt(H)
    wq_s = (wq * scale).astype(dtype)
    bq_s = (bq * scale).astype(dtype)
    wk = wk.astype(dtype); bk = bk.astype(dtype)
    wv = wv.astype(dtype); bv = bv.astype(dtype)

    TQ = _pick_tile(S, q_tile, itemsize)

    # Honest VMEM accounting: resident blocks once (or x2 without Buffered(1)),
    # streamed tiles x buffer count, K/V scratch once, f32 temporaries explicitly.
    n_w_buf = 1 if _supports_single_buffering() else 2
    resident = n_w_buf * (3 * H * H + 3 * H) * itemsize        # Wq/Wk/Wv + biases
    x_blk = 2 * S * H * itemsize                               # per-batch x (double-buffered)
    o_blk = 2 * TQ * H * itemsize                              # output tile (double-buffered)
    kv_scr = 2 * S * H * itemsize                              # K/V scratch (single copy)
    f32_tmp = (2 * TQ * S + 2 * TQ * H + 2 * S * H) * 4        # score/exp + q/out + K/V proj
    need = resident + x_blk + o_blk + kv_scr + f32_tmp

    # Grid: batches outer ("parallel", megacore-shardable since each core sees
    # whole batches and re-projects K/V at its own qi == 0), query tiles inner
    # ("arbitrary": the K/V scratch is carried across qi within a batch).
    # TODO(synk): when B == 1 on v7x (2 TCs) the qi axis is sequential, so one core
    #             idles; a flash-style key-axis split would restore 2-core use.
    out = pl.pallas_call(
        _fused_attention_kernel,
        out_shape=jax.ShapeDtypeStruct((B, S, H), dtype),
        grid_spec=pltpu.PrefetchScalarGridSpec(
            num_scalar_prefetch=0,
            grid=(B, S // TQ),
            in_specs=[
                pl.BlockSpec((None, S, H), lambda b, qi: (b, 0, 0)),   # x (resident per batch)
                _resident_spec((H, H), lambda b, qi: (0, 0)),          # Wq (pre-scaled)
                _resident_spec((H, H), lambda b, qi: (0, 0)),          # Wk
                _resident_spec((H, H), lambda b, qi: (0, 0)),          # Wv
                _resident_spec((1, H), lambda b, qi: (0, 0)),          # bq (pre-scaled)
                _resident_spec((1, H), lambda b, qi: (0, 0)),          # bk
                _resident_spec((1, H), lambda b, qi: (0, 0)),          # bv
            ],
            out_specs=pl.BlockSpec((None, TQ, H), lambda b, qi: (b, qi, 0)),
            scratch_shapes=[pltpu.VMEM((S, H), dtype),                 # K scratch
                            pltpu.VMEM((S, H), dtype)],                # V scratch
        ),
        compiler_params=pltpu.CompilerParams(
            dimension_semantics=("parallel", "arbitrary"),
            vmem_limit_bytes=_vmem_limit_bytes(need)),
    )(x, wq_s, wk, wv, bq_s, bk, bv)
    return out


def reference_self_attention(x, wq, bq, wk, bk, wv, bv):
    """Pure-JAX reference matching the PyTorch forward (eval mode)."""
    q = x @ wq + bq
    k = x @ wk + bk
    v = x @ wv + bv
    score = (q @ jnp.swapaxes(k, -1, -2)) / math.sqrt(x.shape[-1])
    p = jax.nn.softmax(score, axis=-1)
    return p @ v


if __name__ == "__main__":
    key = jax.random.PRNGKey(0)
    B, S, H = 2, 8, 32  # batch, seq, hidden_dim

    k_x, k_wq, k_bq, k_wk, k_bk, k_wv, k_bv = jax.random.split(key, 7)

    x = jax.random.normal(k_x, (B, S, H), dtype=jnp.float32)

    # nn.Linear(H, H) weights are (out=H, in=H); we store the transposed version
    # so the kernel computes x @ W (== x @ W_torch.T).
    bound = 1.0 / math.sqrt(H)

    def init_w(k):
        return jax.random.uniform(k, (H, H), jnp.float32, -bound, bound)

    def init_b(k):
        return jax.random.uniform(k, (1, H), jnp.float32, -bound, bound)

    wq, wk, wv = init_w(k_wq), init_w(k_wk), init_w(k_wv)
    bq, bk, bv = init_b(k_bq), init_b(k_bk), init_b(k_bv)

    out = self_attention(x, wq, bq, wk, bk, wv, bv)
    out = jax.block_until_ready(out)

    ref = reference_self_attention(x, wq, bq, wk, bk, wv, bv)
    assert out.shape == (B, S, H)
    # The kernel accumulates in f32 and uses an exact softmax divide (no approx
    # reciprocal any more); the tolerance mainly covers the default-precision
    # matmuls inside the pure-JAX reference on TPU.
    assert jnp.allclose(out, ref, atol=2e-3, rtol=2e-3), (
        f"max abs err = {jnp.max(jnp.abs(out - ref))}")

    print("KERNEL_OK")
</pallas_src>

<mosaic_0001>
module attributes {stable_mosaic.version = 11 : i64} {
  func.func @_copy_kernel(%arg0: i32, %arg1: memref<8x128xf32, #tpu.memory_space<vmem>>, %arg2: memref<8x128xf32, #tpu.memory_space<vmem>>) attributes {dimension_semantics = [#tpu.dimension_semantics<arbitrary>], iteration_bounds = array<i64: 1>, scalar_prefetch = 0 : i64, scratch_operands = 0 : i64, tpu.core_type = #tpu.core_type<tc>, window_params = [{pipeline_mode = #tpu.pipeline_mode<synchronous>, transform_indices = @transform_0, window_bounds = array<i64: 8, 128>}, {pipeline_mode = #tpu.pipeline_mode<synchronous>, transform_indices = @transform_1, window_bounds = array<i64: 8, 128>}]} {
    %c0 = arith.constant 0 : index
    %c0_0 = arith.constant 0 : index
    %0 = vector.load %arg1[%c0, %c0_0] : memref<8x128xf32, #tpu.memory_space<vmem>>, vector<8x128xf32>
    %c0_1 = arith.constant 0 : index
    %c0_2 = arith.constant 0 : index
    %1 = vector.load %arg2[%c0_1, %c0_2] : memref<8x128xf32, #tpu.memory_space<vmem>>, vector<8x128xf32>
    tpu.vector_store %arg2[%c0_1, %c0_2], %0 {strides = array<i32>} : memref<8x128xf32, #tpu.memory_space<vmem>>, vector<8x128xf32>,
    return
  }
  func.func @transform_0(%arg0: i32) -> (i32, i32) {
    %c0_i32 = arith.constant 0 : i32
    %c0_i32_0 = arith.constant 0 : i32
    %c0_i32_1 = arith.constant 0 : i32
    return %c0_i32, %c0_i32_0 : i32, i32
  }
  func.func @transform_1(%arg0: i32) -> (i32, i32) {
    %c0_i32 = arith.constant 0 : i32
    %c0_i32_0 = arith.constant 0 : i32
    %c0_i32_1 = arith.constant 0 : i32
    return %c0_i32, %c0_i32_0 : i32, i32
  }
}

module attributes {stable_mosaic.version = 11 : i64} {
  func.func @_fused_attention_kernel(%arg0: i32, %arg1: i32, %arg2: memref<1x8x32xf32, #tpu.memory_space<vmem>>, %arg3: memref<32x32xf32, #tpu.memory_space<vmem>>, %arg4: memref<32x32xf32, #tpu.memory_space<vmem>>, %arg5: memref<32x32xf32, #tpu.memory_space<vmem>>, %arg6: memref<1x32xf32, #tpu.memory_space<vmem>>, %arg7: memref<1x32xf32, #tpu.memory_space<vmem>>, %arg8: memref<1x32xf32, #tpu.memory_space<vmem>>, %arg9: memref<1x8x32xf32, #tpu.memory_space<vmem>>, %arg10: memref<8x32xf32, #tpu.memory_space<vmem>>, %arg11: memref<8x32xf32, #tpu.memory_space<vmem>>) attributes {dimension_semantics = [#tpu.dimension_semantics<parallel>, #tpu.dimension_semantics<arbitrary>], iteration_bounds = array<i64: 2, 1>, scalar_prefetch = 0 : i64, scratch_operands = 2 : i64, tpu.core_type = #tpu.core_type<tc>, window_params = [{transform_indices = @transform_0, window_bounds = array<i64: 1, 8, 32>}, {pipeline_mode = #tpu.pipeline_mode<synchronous>, transform_indices = @transform_1, window_bounds = array<i64: 32, 32>}, {pipeline_mode = #tpu.pipeline_mode<synchronous>, transform_indices = @transform_2, window_bounds = array<i64: 32, 32>}, {pipeline_mode = #tpu.pipeline_mode<synchronous>, transform_indices = @transform_3, window_bounds = array<i64: 32, 32>}, {pipeline_mode = #tpu.pipeline_mode<synchronous>, transform_indices = @transform_4, window_bounds = array<i64: 1, 32>}, {pipeline_mode = #tpu.pipeline_mode<synchronous>, transform_indices = @transform_5, window_bounds = array<i64: 1, 32>}, {pipeline_mode = #tpu.pipeline_mode<synchronous>, transform_indices = @transform_6, window_bounds = array<i64: 1, 32>}, {transform_indices = @transform_7, window_bounds = array<i64: 1, 8, 32>}]} {
    %c0_i32 = arith.constant 0 : i32
    %0 = arith.cmpi eq, %arg1, %c0_i32 : i32
    %1 = arith.extui %0 : i1 to i32
    %c0_i32_0 = arith.constant 0 : i32
    %2 = arith.cmpi ne, %1, %c0_i32_0 : i32
    scf.if %2 {
      %c0_17 = arith.constant 0 : index
      %c0_18 = arith.constant 0 : index
      %c0_19 = arith.constant 0 : index
      %29 = vector.load %arg2[%c0_17, %c0_18, %c0_19] : memref<1x8x32xf32, #tpu.memory_space<vmem>>, vector<1x8x32xf32>
      %30 = vector.shape_cast %29 : vector<1x8x32xf32> to vector<8x32xf32>
      %c0_20 = arith.constant 0 : index
      %c0_21 = arith.constant 0 : index
      %31 = vector.load %arg4[%c0_20, %c0_21] : memref<32x32xf32, #tpu.memory_space<vmem>>, vector<32x32xf32>
      %cst_22 = arith.constant dense<0.000000e+00> : vector<8x32xf32>
      %32 = tpu.matmul %30, %31, %cst_22 {dimension_numbers = #tpu.dot_dimension_numbers<[1], [0], [0], [1], [0, 0, 1, 1], [], []>} : vector<8x32xf32>, vector<32x32xf32>, vector<8x32xf32> -> vector<8x32xf32>
      %c0_23 = arith.constant 0 : index
      %c0_24 = arith.constant 0 : index
      %33 = vector.load %arg7[%c0_23, %c0_24] : memref<1x32xf32, #tpu.memory_space<vmem>>, vector<1x32xf32>
      %34 = vector.broadcast %33 : vector<1x32xf32> to vector<8x32xf32>
      %35 = arith.addf %32, %34 : vector<8x32xf32>
      %c0_25 = arith.constant 0 : index
      %c0_26 = arith.constant 0 : index
      %36 = vector.load %arg10[%c0_25, %c0_26] : memref<8x32xf32, #tpu.memory_space<vmem>>, vector<8x32xf32>
      tpu.vector_store %arg10[%c0_25, %c0_26], %35 {strides = array<i32>} : memref<8x32xf32, #tpu.memory_space<vmem>>, vector<8x32xf32>,
      %c0_27 = arith.constant 0 : index
      %c0_28 = arith.constant 0 : index
      %37 = vector.load %arg5[%c0_27, %c0_28] : memref<32x32xf32, #tpu.memory_space<vmem>>, vector<32x32xf32>
      %cst_29 = arith.constant dense<0.000000e+00> : vector<8x32xf32>
      %38 = tpu.matmul %30, %37, %cst_29 {dimension_numbers = #tpu.dot_dimension_numbers<[1], [0], [0], [1], [0, 0, 1, 1], [], []>} : vector<8x32xf32>, vector<32x32xf32>, vector<8x32xf32> -> vector<8x32xf32>
      %c0_30 = arith.constant 0 : index
      %c0_31 = arith.constant 0 : index
      %39 = vector.load %arg8[%c0_30, %c0_31] : memref<1x32xf32, #tpu.memory_space<vmem>>, vector<1x32xf32>
      %40 = vector.broadcast %39 : vector<1x32xf32> to vector<8x32xf32>
      %41 = arith.addf %38, %40 : vector<8x32xf32>
      %c0_32 = arith.constant 0 : index
      %c0_33 = arith.constant 0 : index
      %42 = vector.load %arg11[%c0_32, %c0_33] : memref<8x32xf32, #tpu.memory_space<vmem>>, vector<8x32xf32>
      tpu.vector_store %arg11[%c0_32, %c0_33], %41 {strides = array<i32>} : memref<8x32xf32, #tpu.memory_space<vmem>>, vector<8x32xf32>,
    } else {
    }
    %c8_i32 = arith.constant 8 : i32
    %3 = arith.muli %arg1, %c8_i32 : i32
    %4 = tpu.assume_multiple %3, 8 : i32
    %c0 = arith.constant 0 : index
    %5 = arith.index_cast %4 : i32 to index
    %c0_1 = arith.constant 0 : index
    %6 = vector.load %arg2[%c0, %5, %c0_1] : memref<1x8x32xf32, #tpu.memory_space<vmem>>, vector<1x8x32xf32>
    %7 = vector.shape_cast %6 : vector<1x8x32xf32> to vector<8x32xf32>
    %c0_2 = arith.constant 0 : index
    %c0_3 = arith.constant 0 : index
    %8 = vector.load %arg3[%c0_2, %c0_3] : memref<32x32xf32, #tpu.memory_space<vmem>>, vector<32x32xf32>
    %cst = arith.constant dense<0.000000e+00> : vector<8x32xf32>
    %9 = tpu.matmul %7, %8, %cst {dimension_numbers = #tpu.dot_dimension_numbers<[1], [0], [0], [1], [0, 0, 1, 1], [], []>} : vector<8x32xf32>, vector<32x32xf32>, vector<8x32xf32> -> vector<8x32xf32>
    %c0_4 = arith.constant 0 : index
    %c0_5 = arith.constant 0 : index
    %10 = vector.load %arg6[%c0_4, %c0_5] : memref<1x32xf32, #tpu.memory_space<vmem>>, vector<1x32xf32>
    %11 = vector.broadcast %10 : vector<1x32xf32> to vector<8x32xf32>
    %12 = arith.addf %9, %11 : vector<8x32xf32>
    %c0_6 = arith.constant 0 : index
    %c0_7 = arith.constant 0 : index
    %13 = vector.load %arg10[%c0_6, %c0_7] : memref<8x32xf32, #tpu.memory_space<vmem>>, vector<8x32xf32>
    %cst_8 = arith.constant dense<0.000000e+00> : vector<8x8xf32>
    %14 = tpu.matmul %12, %13, %cst_8 {dimension_numbers = #tpu.dot_dimension_numbers<[1], [1], [0], [0], [0, 0, 1, 0], [], []>} : vector<8x32xf32>, vector<8x32xf32>, vector<8x8xf32> -> vector<8x8xf32>
    %cst_9 = arith.constant dense<0xFF800000> : vector<8xf32>
    %15 = vector.multi_reduction <maximumf>, %14, %cst_9 [1] : vector<8x8xf32> to vector<8xf32>
    %16 = vector.shape_cast %15 : vector<8xf32> to vector<8x1xf32>
    %17 = vector.broadcast %16 : vector<8x1xf32> to vector<8x8xf32>
    %18 = arith.subf %14, %17 : vector<8x8xf32>
    %19 = math.exp %18 : vector<8x8xf32>
    %cst_10 = arith.constant dense<0.000000e+00> : vector<8xf32>
    %20 = vector.multi_reduction <add>, %19, %cst_10 [1] : vector<8x8xf32> to vector<8xf32>
    %21 = vector.shape_cast %20 : vector<8xf32> to vector<8x1xf32>
    %22 = vector.broadcast %21 : vector<8x1xf32> to vector<8x8xf32>
    %23 = arith.divf %19, %22 : vector<8x8xf32>
    %c0_11 = arith.constant 0 : index
    %c0_12 = arith.constant 0 : index
    %24 = vector.load %arg11[%c0_11, %c0_12] : memref<8x32xf32, #tpu.memory_space<vmem>>, vector<8x32xf32>
    %cst_13 = arith.constant dense<0.000000e+00> : vector<8x32xf32>
    %25 = tpu.matmul %23, %24, %cst_13 {dimension_numbers = #tpu.dot_dimension_numbers<[1], [0], [0], [1], [0, 0, 1, 1], [], []>} : vector<8x8xf32>, vector<8x32xf32>, vector<8x32xf32> -> vector<8x32xf32>
    %c0_14 = arith.constant 0 : index
    %c0_15 = arith.constant 0 : index
    %c0_16 = arith.constant 0 : index
    %26 = vector.load %arg9[%c0_14, %c0_15, %c0_16] : memref<1x8x32xf32, #tpu.memory_space<vmem>>, vector<1x8x32xf32>
    %27 = vector.shape_cast %26 : vector<1x8x32xf32> to vector<8x32xf32>
    %28 = vector.shape_cast %25 : vector<8x32xf32> to vector<1x8x32xf32>
    tpu.vector_store %arg9[%c0_14, %c0_15, %c0_16], %28 {strides = array<i32>} : memref<1x8x32xf32, #tpu.memory_space<vmem>>, vector<1x8x32xf32>,
    return
  }
  func.func @transform_0(%arg0: i32, %arg1: i32) -> (i32, i32, i32) {
    %c0_i32 = arith.constant 0 : i32
    %c0_i32_0 = arith.constant 0 : i32
    %c0_i32_1 = arith.constant 0 : i32
    return %arg0, %c0_i32, %c0_i32_0 : i32, i32, i32
  }
  func.func @transform_1(%arg0: i32, %arg1: i32) -> (i32, i32) {
    %c0_i32 = arith.constant 0 : i32
    %c0_i32_0 = arith.constant 0 : i32
    %c0_i32_1 = arith.constant 0 : i32
    return %c0_i32, %c0_i32_0 : i32, i32
  }
  func.func @transform_2(%arg0: i32, %arg1: i32) -> (i32, i32) {
    %c0_i32 = arith.constant 0 : i32
    %c0_i32_0 = arith.constant 0 : i32
    %c0_i32_1 = arith.constant 0 : i32
    return %c0_i32, %c0_i32_0 : i32, i32
  }
  func.func @transform_3(%arg0: i32, %arg1: i32) -> (i32, i32) {
    %c0_i32 = arith.constant 0 : i32
    %c0_i32_0 = arith.constant 0 : i32
    %c0_i32_1 = arith.constant 0 : i32
    return %c0_i32, %c0_i32_0 : i32, i32
  }
  func.func @transform_4(%arg0: i32, %arg1: i32) -> (i32, i32) {
    %c0_i32 = arith.constant 0 : i32
    %c0_i32_0 = arith.constant 0 : i32
    %c0_i32_1 = arith.constant 0 : i32
    return %c0_i32, %c0_i32_0 : i32, i32
  }
  func.func @transform_5(%arg0: i32, %arg1: i32) -> (i32, i32) {
    %c0_i32 = arith.constant 0 : i32
    %c0_i32_0 = arith.constant 0 : i32
    %c0_i32_1 = arith.constant 0 : i32
    return %c0_i32, %c0_i32_0 : i32, i32
  }
  func.func @transform_6(%arg0: i32, %arg1: i32) -> (i32, i32) {
    %c0_i32 = arith.constant 0 : i32
    %c0_i32_0 = arith.constant 0 : i32
    %c0_i32_1 = arith.constant 0 : i32
    return %c0_i32, %c0_i32_0 : i32, i32
  }
  func.func @transform_7(%arg0: i32, %arg1: i32) -> (i32, i32, i32) {
    %c0_i32 = arith.constant 0 : i32
    %c0_i32_0 = arith.constant 0 : i32
    return %arg0, %arg1, %c0_i32 : i32, i32, i32
  }
}

</mosaic_0001>

<llo_original>
// kernel: tpu_custom_call.1
$region0: #{tpu_custom_call.1}
  #allocation0 [shape = 'u32[]', space=smem, size = 0x4, offset = 0x4, fixed_abs, tag = 'smem constant byte address 0x4 - core index']
  #allocation1 [shape = 'u32[72,128]{1,0:T(1,128)}', space=vmem, size = 0x9000, scoped, tag = 'internal scratch']
  %s0 = inlined_call_operand.hbm [shape: f32[8,128], index: 0, kind: input, shape index: {}]
  %s1 = inlined_call_operand.hbm [shape: f32[8,128], index: 1, kind: output, shape index: {}]
  %s2 = sld [smem:[#allocation0]]
  $region18: #{tpu_custom_call.1} parent=0
    _
  %s4 = ssub.s32 1, %s2
  %s5 = scalar_select 0, %s4, %s2
  $region1: #{tpu_custom_call.1} parent=0
    #allocation2 [shape = 'u8[4096]{0}', space=vmem, size = 0x1000, scoped, tag = 'input window, operand 0, single buffered']
    #allocation3 [shape = 's32[1]{0}', space=sflag, size = 0x4, scoped, tag = 'scoped memory for tpu_custom_call.1']
    #allocation4 [shape = 's32[1]{0}', space=sflag, size = 0x4, scoped, tag = 'scoped memory for tpu_custom_call.1']
    #allocation5 [shape = 'u8[4096]{0}', space=vmem, size = 0x1000, scoped, tag = 'output window, operand 0, single buffered']
    %6 = vsyncpa [#allocation3], 0
    %7 = vsyncpa [#allocation4], 0
    // Predicated region
    $region2: #{tpu_custom_call.1} parent=1 // pred_check
      _
    $region3: #{tpu_custom_call.1} parent=1 // pred_check_branch
      %9 = sbr.rel (0) target = $region5
    $region4: #{tpu_custom_call.1} parent=1 // pred_region
      %11 = vsyncadd [#allocation3], 0
      %s13 = sshll.u32 %s0, 4
      %s14 = int_to_ptr.hbm [resolvable:$true] %s13
      %s15 = sshll.u32 [#allocation2], 4
      %s16 = int_to_ptr.vmem [resolvable:$true] %s15
      %18 = dma.hbm_to_vmem [thread:$0]  %s14, 128, %s16, [#allocation3]
    $region5: #{tpu_custom_call.1} parent=1 // pred_fallthru
      _
    // Predicated region
    $region6: #{tpu_custom_call.1} parent=1 // pred_check
      _
    $region7: #{tpu_custom_call.1} parent=1 // pred_check_branch
      %20 = sbr.rel (0) target = $region9
    $region8: #{tpu_custom_call.1} parent=1 // pred_region
      %22 = dma.done [#allocation3], 128
    $region9: #{tpu_custom_call.1} parent=1 // pred_fallthru
      _
    %v23 = vld [vmem:[#allocation2] sm:$0xff]
    %24 = vst [vmem:[#allocation5] sm:$0xff] %v23
    // Predicated region
    $region10: #{tpu_custom_call.1} parent=1 // pred_check
      _
    $region11: #{tpu_custom_call.1} parent=1 // pred_check_branch
      %26 = sbr.rel (0) target = $region13
    $region12: #{tpu_custom_call.1} parent=1 // pred_region
      %28 = vsyncadd [#allocation4], 0
      %s30 = sshll.u32 [#allocation5], 4
      %s31 = int_to_ptr.vmem [resolvable:$true] %s30
      %s32 = sshll.u32 %s1, 4
      %s33 = int_to_ptr.hbm [resolvable:$true] %s32
      %35 = dma.vmem_to_hbm [thread:$0]  %s31, 128, %s33, [#allocation4]
    $region13: #{tpu_custom_call.1} parent=1 // pred_fallthru
      _
    // Predicated region
    $region14: #{tpu_custom_call.1} parent=1 // pred_check
      _
    $region15: #{tpu_custom_call.1} parent=1 // pred_check_branch
      %37 = sbr.rel (0) target = $region17
    $region16: #{tpu_custom_call.1} parent=1 // pred_region
      %39 = dma.done [#allocation4], 128
    $region17: #{tpu_custom_call.1} parent=1 // pred_fallthru
      _
    %40 = vsyncpa [#allocation3], 1
    %41 = vsyncpa [#allocation4], 1

// kernel: tpu_custom_call.1
$region0: #{tpu_custom_call.1}
  #allocation0 [shape = 'u32[]', space=smem, size = 0x4, offset = 0x4, fixed_abs, tag = 'smem constant byte address 0x4 - core index']
  #allocation1 [shape = 'u32[72,128]{1,0:T(1,128)}', space=vmem, size = 0x9000, scoped, tag = 'internal scratch']
  #allocation2 [shape = 'f32[8,32]{1,0:T(8,128)}', space=vmem, size = 0x1000, scoped, tag = 'scratch operand']
  #allocation3 [shape = 'f32[8,32]{1,0:T(8,128)}', space=vmem, size = 0x1000, scoped, tag = 'scratch operand']
  %s0 = inlined_call_operand.hbm [shape: f32[2,8,32], index: 0, kind: input, shape index: {}]
  %s1 = inlined_call_operand.hbm [shape: f32[32,32], index: 1, kind: input, shape index: {}]
  %s2 = inlined_call_operand.hbm [shape: f32[32,32], index: 2, kind: input, shape index: {}]
  %s3 = inlined_call_operand.hbm [shape: f32[32,32], index: 3, kind: input, shape index: {}]
  %s4 = inlined_call_operand.vmem [shape: f32[1,32], index: 4, kind: input, shape index: {}]
  %s5 = inlined_call_operand.vmem [shape: f32[1,32], index: 5, kind: input, shape index: {}]
  %s6 = inlined_call_operand.vmem [shape: f32[1,32], index: 6, kind: input, shape index: {}]
  %s7 = inlined_call_operand.hbm [shape: f32[2,8,32], index: 7, kind: output, shape index: {}]
  %s8 = sld [smem:[#allocation0]]
  $region81: #{tpu_custom_call.1} parent=0
    _
  %s10 = ssub.s32 1, %s8
  %s11 = scalar_select 0, %s10, %s8
  $region1: #{tpu_custom_call.1} parent=0
    #allocation4 [shape = 'u8[8192]{0}', space=vmem, size = 0x2000, scoped, tag = 'input window, operand 0']
    #allocation5 [shape = 's32[2]{0}', space=sflag, size = 0x8, scoped, tag = 'scoped memory for tpu_custom_call.1']
    #allocation6 [shape = 's32[2]{0}', space=sflag, size = 0x8, scoped, tag = 'scoped memory for tpu_custom_call.1']
    #allocation7 [shape = 'u8[16384]{0}', space=vmem, size = 0x4000, scoped, tag = 'input window, operand 1, single buffered']
    #allocation8 [shape = 's32[1]{0}', space=sflag, size = 0x4, scoped, tag = 'scoped memory for tpu_custom_call.1']
    #allocation9 [shape = 'u8[16384]{0}', space=vmem, size = 0x4000, scoped, tag = 'input window, operand 2, single buffered']
    #allocation10 [shape = 'u8[16384]{0}', space=vmem, size = 0x4000, scoped, tag = 'input window, operand 3, single buffered']
    #allocation11 [shape = 's32[1]{0}', space=sflag, size = 0x4, scoped, tag = 'scoped memory for tpu_custom_call.1']
    #allocation12 [shape = 'u8[8192]{0}', space=vmem, size = 0x2000, scoped, tag = 'output window, operand 0']
    %12 = vsyncpa [#allocation5], 0
    %s13 = scalar_lea.sflag [#allocation5], 1
    %14 = vsyncpa %s13, 0
    %15 = vsyncpa [#allocation8], 0
    %16 = vsyncpa [#allocation11], 0
    %17 = vsyncpa [#allocation6], 0
    %s18 = scalar_lea.sflag [#allocation6], 1
    %19 = vsyncpa %s18, 0
    loop: start=0, step=1, limit=4
    $region2: #{tpu_custom_call.1} parent=1 // loop_pre_header
      _
    $region3: #{tpu_custom_call.1} parent=1 // loop_header
      %s21 = sphi 0, %s25
      %p22 = scmp.ge.s32.totalorder %s21, 4
      %s28 = sphi 0, %s40
      %s29 = sphi 0, %s36
      %s30 = sphi 0, %s28
      %s31 = sphi 0, %s29
      %s32 = sphi 0, %s30
      %s33 = sphi 0, %s31
      %s43 = sphi 0, %s45
      %s46 = sphi 0, %s43
      %s47 = sphi 0, %s46
      %s63 = sphi 0, %s47
      %s67 = sphi 0, %s67
      %s69 = sphi 0, %s67
      %s70 = sphi 0, %s69
      %s84 = sphi 0, %s70
      %s88 = sphi 0, %s88
      %s90 = sphi 0, %s88
      %s91 = sphi 0, %s90
      %s105 = sphi 0, %s91
      %s109 = sphi 0, %s109
      %s111 = sphi 0, %s109
      %s112 = sphi 0, %s111
      %s126 = sphi 0, %s112
      %s130 = sphi 0, %s130
      %s132 = sphi 0, %s130
      %s133 = sphi 0, %s132
      %s147 = sphi 0, %s133
      %s151 = sphi 0, %s151
      %s153 = sphi 0, %s151
      %s154 = sphi 0, %s153
      %s168 = sphi 0, %s154
      %s172 = sphi 0, %s172
      %s174 = sphi 0, %s172
      %s175 = sphi 0, %s174
      %s189 = sphi 0, %s175
      %s197 = sphi 0, %s199
      %s200 = sphi 0, %s197
      %s201 = sphi 0, %s200
      %s217 = sphi 0, %s201
    $region4: #{tpu_custom_call.1} parent=1 // loop_header_branch
      %24 = sbr.rel (%p22) target = $region8
    $region5: #{tpu_custom_call.1} parent=1 // loop_body
      %s26 = ssub.s32 %s21, 1
      %s27 = ssub.s32 %s21, 2
      %s34 = sadd.s32 1, %s29
      %p35 = scmp.ge.s32.totalorder %s34, 1
      %s36 = scalar_select %p35, 0, %s34
      %s37 = sadd.s32 1, %s28
      %s38 = scalar_select %p35, %s37, %s28
      %p39 = scmp.ge.s32.totalorder %s38, 2
      %s40 = scalar_select %p39, 0, %s38
      %s41 = ssub.s32 %s28, %s40
      %p42 = scmp.eq.s32.totalorder %s41, 0
      %s44 = sadd.s32 %s43, 1
      %s45 = scalar_select %p42, %s43, %s44
      %p48 = pneg %p42
      %p49 = scmp.eq.s32.totalorder %s21, 1
      %p50 = por %p48, %p49
      %p51 = scmp.ne.s32.totalorder %s43, %s46
      %p52 = scmp.eq.s32.totalorder %s21, 0
      %p53 = por %p51, %p52
      %p54 = scmp.ne.s32.totalorder %s43, %s46
      %p55 = scmp.eq.s32.totalorder %s26, 1
      %p56 = por %p54, %p55
      %p57 = scmp.ne.s32.totalorder %s46, %s47
      %p58 = scmp.eq.s32.totalorder %s26, 0
      %p59 = por %p57, %p58
      %p60 = scmp.ne.s32.totalorder %s46, %s47
      %p61 = scmp.eq.s32.totalorder %s27, 1
      %p62 = por %p60, %p61
      %p64 = scmp.ne.s32.totalorder %s47, %s63
      %p65 = scmp.eq.s32.totalorder %s27, 0
      %p66 = por %p64, %p65
      %s68 = sadd.s32 %s67, 1
      %p71 = scmp.eq.s32.totalorder %s21, 1
      %p72 = scmp.ne.s32.totalorder %s67, %s69
      %p73 = scmp.eq.s32.totalorder %s21, 0
      %p74 = por %p72, %p73
      %p75 = scmp.ne.s32.totalorder %s67, %s69
      %p76 = scmp.eq.s32.totalorder %s26, 1
      %p77 = por %p75, %p76
      %p78 = scmp.ne.s32.totalorder %s69, %s70
      %p79 = scmp.eq.s32.totalorder %s26, 0
      %p80 = por %p78, %p79
      %p81 = scmp.ne.s32.totalorder %s69, %s70
      %p82 = scmp.eq.s32.totalorder %s27, 1
      %p83 = por %p81, %p82
      %p85 = scmp.ne.s32.totalorder %s70, %s84
      %p86 = scmp.eq.s32.totalorder %s27, 0
      %p87 = por %p85, %p86
      %s89 = sadd.s32 %s88, 1
      %p92 = scmp.eq.s32.totalorder %s21, 1
      %p93 = scmp.ne.s32.totalorder %s88, %s90
      %p94 = scmp.eq.s32.totalorder %s21, 0
      %p95 = por %p93, %p94
      %p96 = scmp.ne.s32.totalorder %s88, %s90
      %p97 = scmp.eq.s32.totalorder %s26, 1
      %p98 = por %p96, %p97
      %p99 = scmp.ne.s32.totalorder %s90, %s91
      %p100 = scmp.eq.s32.totalorder %s26, 0
      %p101 = por %p99, %p100
      %p102 = scmp.ne.s32.totalorder %s90, %s91
      %p103 = scmp.eq.s32.totalorder %s27, 1
      %p104 = por %p102, %p103
      %p106 = scmp.ne.s32.totalorder %s91, %s105
      %p107 = scmp.eq.s32.totalorder %s27, 0
      %p108 = por %p106, %p107
      %s110 = sadd.s32 %s109, 1
      %p113 = scmp.eq.s32.totalorder %s21, 1
      %p114 = scmp.ne.s32.totalorder %s109, %s111
      %p115 = scmp.eq.s32.totalorder %s21, 0
      %p116 = por %p114, %p115
      %p117 = scmp.ne.s32.totalorder %s109, %s111
      %p118 = scmp.eq.s32.totalorder %s26, 1
      %p119 = por %p117, %p118
      %p120 = scmp.ne.s32.totalorder %s111, %s112
      %p121 = scmp.eq.s32.totalorder %s26, 0
      %p122 = por %p120, %p121
      %p123 = scmp.ne.s32.totalorder %s111, %s112
      %p124 = scmp.eq.s32.totalorder %s27, 1
      %p125 = por %p123, %p124
      %p127 = scmp.ne.s32.totalorder %s112, %s126
      %p128 = scmp.eq.s32.totalorder %s27, 0
      %p129 = por %p127, %p128
      %s131 = sadd.s32 %s130, 1
      %p134 = scmp.eq.s32.totalorder %s21, 1
      %p135 = scmp.ne.s32.totalorder %s130, %s132
      %p136 = scmp.eq.s32.totalorder %s21, 0
      %p137 = por %p135, %p136
      %p138 = scmp.ne.s32.totalorder %s130, %s132
      %p139 = scmp.eq.s32.totalorder %s26, 1
      %p140 = por %p138, %p139
      %p141 = scmp.ne.s32.totalorder %s132, %s133
      %p142 = scmp.eq.s32.totalorder %s26, 0
      %p143 = por %p141, %p142
      %p144 = scmp.ne.s32.totalorder %s132, %s133
      %p145 = scmp.eq.s32.totalorder %s27, 1
      %p146 = por %p144, %p145
      %p148 = scmp.ne.s32.totalorder %s133, %s147
      %p149 = scmp.eq.s32.totalorder %s27, 0
      %p150 = por %p148, %p149
      %s152 = sadd.s32 %s151, 1
      %p155 = scmp.eq.s32.totalorder %s21, 1
      %p156 = scmp.ne.s32.totalorder %s151, %s153
      %p157 = scmp.eq.s32.totalorder %s21, 0
      %p158 = por %p156, %p157
      %p159 = scmp.ne.s32.totalorder %s151, %s153
      %p160 = scmp.eq.s32.totalorder %s26, 1
      %p161 = por %p159, %p160
      %p162 = scmp.ne.s32.totalorder %s153, %s154
      %p163 = scmp.eq.s32.totalorder %s26, 0
      %p164 = por %p162, %p163
      %p165 = scmp.ne.s32.totalorder %s153, %s154
      %p166 = scmp.eq.s32.totalorder %s27, 1
      %p167 = por %p165, %p166
      %p169 = scmp.ne.s32.totalorder %s154, %s168
      %p170 = scmp.eq.s32.totalorder %s27, 0
      %p171 = por %p169, %p170
      %s173 = sadd.s32 %s172, 1
      %p176 = scmp.eq.s32.totalorder %s21, 1
      %p177 = scmp.ne.s32.totalorder %s172, %s174
      %p178 = scmp.eq.s32.totalorder %s21, 0
      %p179 = por %p177, %p178
      %p180 = scmp.ne.s32.totalorder %s172, %s174
      %p181 = scmp.eq.s32.totalorder %s26, 1
      %p182 = por %p180, %p181
      %p183 = scmp.ne.s32.totalorder %s174, %s175
      %p184 = scmp.eq.s32.totalorder %s26, 0
      %p185 = por %p183, %p184
      %p186 = scmp.ne.s32.totalorder %s174, %s175
      %p187 = scmp.eq.s32.totalorder %s27, 1
      %p188 = por %p186, %p187
      %p190 = scmp.ne.s32.totalorder %s175, %s189
      %p191 = scmp.eq.s32.totalorder %s27, 0
      %p192 = por %p190, %p191
      %s193 = ssub.s32 %s28, %s40
      %s194 = ssub.s32 %s29, %s36
      %s195 = sor.u32 %s193, %s194
      %p196 = scmp.eq.s32.totalorder %s195, 0
      %s198 = sadd.s32 %s197, 1
      %s199 = scalar_select %p196, %s197, %s198
      %p202 = pneg %p196
      %p203 = scmp.eq.s32.totalorder %s21, 1
      %p204 = por %p202, %p203
      %p205 = scmp.ne.s32.totalorder %s197, %s200
      %p206 = scmp.eq.s32.totalorder %s21, 0
      %p207 = por %p205, %p206
      %p208 = scmp.ne.s32.totalorder %s197, %s200
      %p209 = scmp.eq.s32.totalorder %s26, 1
      %p210 = por %p208, %p209
      %p211 = scmp.ne.s32.totalorder %s200, %s201
      %p212 = scmp.eq.s32.totalorder %s26, 0
      %p213 = por %p211, %p212
      %p214 = scmp.ne.s32.totalorder %s200, %s201
      %p215 = scmp.eq.s32.totalorder %s27, 1
      %p216 = por %p214, %p215
      %p218 = scmp.ne.s32.totalorder %s201, %s217
      %p219 = scmp.eq.s32.totalorder %s27, 0
      %p220 = por %p218, %p219
      %p221 = scmp.le.s32.totalorder 1, %s21
      %p222 = scmp.lt.s32.totalorder %s21, 3
      %p223 = pnand %p221, %p222
      %p224 = pneg %p223
      // Predicated region
      $region9: #{tpu_custom_call.1} parent=5 // pred_check
        _
      $region10: #{tpu_custom_call.1} parent=5 // pred_check_branch
        %226 = sbr.rel (%p223) target = $region12
      $region11: #{tpu_custom_call.1} parent=5 // pred_region
        %s227 = ssub.s32 %s21, 1
        // Predicated region
        $region13: #{tpu_custom_call.1} parent=11 // pred_check
          %p228 = pneg %p80
        $region14: #{tpu_custom_call.1} parent=11 // pred_check_branch
          %230 = sbr.rel (%p228) target = $region16
        $region15: #{tpu_custom_call.1} parent=11 // pred_region
          %232 = vsyncadd [#allocation8], 0
          %s233 = sshll.u32 %s1, 4
          %s234 = int_to_ptr.hbm [resolvable:$true] %s233
          %s235 = sshll.u32 [#allocation7], 4
          %s236 = int_to_ptr.vmem [resolvable:$true] %s235
          %241 = dma.hbm_to_vmem [thread:$0]  %s234, 512, %s236, [#allocation8], 128, 128, 8
        $region16: #{tpu_custom_call.1} parent=11 // pred_fallthru
          _
        // Predicated region
        $region17: #{tpu_custom_call.1} parent=11 // pred_check
          %p242 = pneg %p101
        $region18: #{tpu_custom_call.1} parent=11 // pred_check_branch
          %244 = sbr.rel (%p242) target = $region20
        $region19: #{tpu_custom_call.1} parent=11 // pred_region
          %246 = vsyncadd [#allocation8], 0
          %s247 = sshll.u32 %s2, 4
          %s248 = int_to_ptr.hbm [resolvable:$true] %s247
          %s249 = sshll.u32 [#allocation9], 4
          %s250 = int_to_ptr.vmem [resolvable:$true] %s249
          %255 = dma.hbm_to_vmem [thread:$0]  %s248, 512, %s250, [#allocation8], 128, 128, 8
        $region20: #{tpu_custom_call.1} parent=11 // pred_fallthru
          _
        // Predicated region
        $region21: #{tpu_custom_call.1} parent=11 // pred_check
          %p256 = pneg %p122
        $region22: #{tpu_custom_call.1} parent=11 // pred_check_branch
          %258 = sbr.rel (%p256) target = $region24
        $region23: #{tpu_custom_call.1} parent=11 // pred_region
          %260 = vsyncadd [#allocation11], 0
          %s261 = sshll.u32 %s3, 4
          %s262 = int_to_ptr.hbm [resolvable:$true] %s261
          %s263 = sshll.u32 [#allocation10], 4
          %s264 = int_to_ptr.vmem [resolvable:$true] %s263
          %269 = dma.hbm_to_vmem [thread:$0]  %s262, 512, %s264, [#allocation11], 128, 128, 8
        $region24: #{tpu_custom_call.1} parent=11 // pred_fallthru
          _
        // Predicated region
        $region25: #{tpu_custom_call.1} parent=11 // pred_check
          %p270 = pneg %p143
        $region26: #{tpu_custom_call.1} parent=11 // pred_check_branch
          %272 = sbr.rel (%p270) target = $region28
        $region27: #{tpu_custom_call.1} parent=11 // pred_region
          _
        $region28: #{tpu_custom_call.1} parent=11 // pred_fallthru
          _
        // Predicated region
        $region29: #{tpu_custom_call.1} parent=11 // pred_check
          %p273 = pneg %p164
        $region30: #{tpu_custom_call.1} parent=11 // pred_check_branch
          %275 = sbr.rel (%p273) target = $region32
        $region31: #{tpu_custom_call.1} parent=11 // pred_region
          _
        $region32: #{tpu_custom_call.1} parent=11 // pred_fallthru
          _
        // Predicated region
        $region33: #{tpu_custom_call.1} parent=11 // pred_check
          %p276 = pneg %p185
        $region34: #{tpu_custom_call.1} parent=11 // pred_check_branch
          %278 = sbr.rel (%p276) target = $region36
        $region35: #{tpu_custom_call.1} parent=11 // pred_region
          _
        $region36: #{tpu_custom_call.1} parent=11 // pred_fallthru
          _
      $region12: #{tpu_custom_call.1} parent=5 // pred_fallthru
        _
      %p279 = scmp.lt.s32.totalorder %s21, 2
      // Predicated region
      $region37: #{tpu_custom_call.1} parent=5 // pred_check
        %p280 = pneg %p279
      $region38: #{tpu_custom_call.1} parent=5 // pred_check_branch
        %282 = sbr.rel (%p280) target = $region40
      $region39: #{tpu_custom_call.1} parent=5 // pred_region
        // Predicated region
        $region41: #{tpu_custom_call.1} parent=39 // pred_check
          %p283 = pneg %p53
        $region42: #{tpu_custom_call.1} parent=39 // pred_check_branch
          %285 = sbr.rel (%p283) target = $region44
        $region43: #{tpu_custom_call.1} parent=39 // pred_region
          %s286 = sand.u32 %s43, 1
          %s287 = scalar_lea.sflag [#allocation5], %s286
          %s288 = sand.u32 %s43, 1
          %s289 = smul.addr %s288, 8
          %s290 = scalar_lea.vmem [#allocation4], %s289
          %292 = vsyncadd %s287, 0
          %s293 = smul.addr %s28, 8
          %s294 = scalar_lea.hbm %s0, %s293
          %s296 = sshll.u32 %s294, 4
          %s297 = int_to_ptr.hbm [resolvable:$true] %s296
          %s298 = sshll.u32 %s290, 4
          %s299 = int_to_ptr.vmem [resolvable:$true] %s298
          %301 = dma.hbm_to_vmem [thread:$0]  %s297, 128, %s299, %s287
        $region44: #{tpu_custom_call.1} parent=39 // pred_fallthru
          _
      $region40: #{tpu_custom_call.1} parent=5 // pred_fallthru
        _
      %p302 = scmp.le.s32.totalorder 1, %s21
      %p303 = scmp.lt.s32.totalorder %s21, 3
      %p304 = pnand %p302, %p303
      %p305 = pneg %p304
      // Predicated region
      $region45: #{tpu_custom_call.1} parent=5 // pred_check
        _
      $region46: #{tpu_custom_call.1} parent=5 // pred_check_branch
        %307 = sbr.rel (%p304) target = $region48
      $region47: #{tpu_custom_call.1} parent=5 // pred_region
        %s308 = ssub.s32 %s21, 1
        %s309 = sand.u32 %s46, 1
        %s310 = scalar_lea.sflag [#allocation5], %s309
        %s311 = sand.u32 %s46, 1
        %s312 = smul.addr %s311, 8
        %s313 = scalar_lea.vmem [#allocation4], %s312
        // Predicated region
        $region49: #{tpu_custom_call.1} parent=47 // pred_check
          %p314 = pneg %p59
        $region50: #{tpu_custom_call.1} parent=47 // pred_check_branch
          %316 = sbr.rel (%p314) target = $region52
        $region51: #{tpu_custom_call.1} parent=47 // pred_region
          %318 = dma.done %s310, 128
        $region52: #{tpu_custom_call.1} parent=47 // pred_fallthru
          _
        // Predicated region
        $region53: #{tpu_custom_call.1} parent=47 // pred_check
          %p319 = pneg %p80
        $region54: #{tpu_custom_call.1} parent=47 // pred_check_branch
          %321 = sbr.rel (%p319) target = $region56
        $region55: #{tpu_custom_call.1} parent=47 // pred_region
          %323 = dma.done [#allocation8], 512
        $region56: #{tpu_custom_call.1} parent=47 // pred_fallthru
          _
        // Predicated region
        $region57: #{tpu_custom_call.1} parent=47 // pred_check
          %p324 = pneg %p101
        $region58: #{tpu_custom_call.1} parent=47 // pred_check_branch
          %326 = sbr.rel (%p324) target = $region60
        $region59: #{tpu_custom_call.1} parent=47 // pred_region
          %328 = dma.done [#allocation8], 512
        $region60: #{tpu_custom_call.1} parent=47 // pred_fallthru
          _
        // Predicated region
        $region61: #{tpu_custom_call.1} parent=47 // pred_check
          %p329 = pneg %p122
        $region62: #{tpu_custom_call.1} parent=47 // pred_check_branch
          %331 = sbr.rel (%p329) target = $region64
        $region63: #{tpu_custom_call.1} parent=47 // pred_region
          %333 = dma.done [#allocation11], 512
        $region64: #{tpu_custom_call.1} parent=47 // pred_fallthru
          _
        %s334 = sand.u32 %s46, 1
        %s335 = scalar_lea.sflag [#allocation5], %s334
        %s336 = sand.u32 %s46, 1
        %s337 = smul.addr %s336, 8
        %s338 = scalar_lea.vmem [#allocation4], %s337
        %p339 = pneg %p59
        %p340 = pneg %p56
        %p341 = pneg %p80
        %p342 = pneg %p77
        %p343 = pneg %p101
        %p344 = pneg %p98
        %p345 = pneg %p122
        %p346 = pneg %p119
        %p347 = pneg %p143
        %p348 = pneg %p140
        %p349 = pneg %p164
        %p350 = pneg %p161
        %p351 = pneg %p185
        %p352 = pneg %p182
        %p353 = pneg %p213
        %p354 = pneg %p210
        %s355 = sand.u32 %s200, 1
        %s356 = scalar_lea.sflag [#allocation6], %s355
        %s357 = sand.u32 %s200, 1
        %s358 = smul.addr %s357, 8
        %s359 = scalar_lea.vmem [#allocation12], %s358
        %p360 = scmp.eq.s32.totalorder %s31, 0
        // Predicated region
        $region65: #{tpu_custom_call.1} parent=47 // pred_check
          %p361 = pneg %p360
        $region66: #{tpu_custom_call.1} parent=47 // pred_check_branch
          %363 = sbr.rel (%p361) target = $region68
        $region67: #{tpu_custom_call.1} parent=47 // pred_region
          %v364 = vld [vmem:[%s313] sm:$0xff]
          %v365 = vld [vmem:[#allocation9] sm:$0xff]
          %v366 = vld [vmem:[#allocation9 + $0x8] sm:$0xff]
          %v367 = vld [vmem:[#allocation9 + $0x10] sm:$0xff]
          %v368 = vld [vmem:[#allocation9 + $0x18] sm:$0xff]
          %v369 = vld [vmem:[%s5] sm:$0x1]
          %v371 = vperm.slane %v369, 0
          %vm373 = vcmask 261120
          %v375 = vsel %vm373, %v364, 0
          %377 = vmatpush.msra.mxu0 0.0
          %378 = vmatpush.msra.mxu0 0.0
          %379 = vmatpush.msra.mxu0 0.0
          %380 = vmatpush.msra.mxu0 0.0
          %381 = vmatpush.msra.mxu0 0.0
          %382 = vmatpush.msra.mxu0 0.0
          %383 = vmatpush.msra.mxu0 0.0
          %384 = vmatpush.msra.mxu0 0.0
          %385 = vmatpush.msra.mxu0 0.0
          %386 = vmatpush.msra.mxu0 0.0
          %387 = vmatpush.msra.mxu0 0.0
          %388 = vmatpush.msra.mxu0 0.0
          %389 = vmatpush.msra.mxu0 %v368
          %390 = vmatpush.msra.mxu0 %v367
          %391 = vmatpush.msra.mxu0 %v366
          %392 = vmatpush.msra.mxu0 %v365
          %393 = vmatmul.f32.gmra.mxu0 %v375
          %v394 = vpop.f32.mrf.mxu0
          %v395 = vadd.f32 %v371, %v394
          %396 = vdwg.mxu0
          %397 = vst.msk [vmem:[#allocation2] sm:$0xff] %vm373, %v395
          %v398 = vld [vmem:[#allocation10] sm:$0xff]
          %v399 = vld [vmem:[#allocation10 + $0x8] sm:$0xff]
          %v400 = vld [vmem:[#allocation10 + $0x10] sm:$0xff]
          %v401 = vld [vmem:[#allocation10 + $0x18] sm:$0xff]
          %v402 = vld [vmem:[%s6] sm:$0x1]
          %v404 = vperm.slane %v402, 0
          %406 = vmatpush.msra.mxu0 0.0
          %407 = vmatpush.msra.mxu0 0.0
          %408 = vmatpush.msra.mxu0 0.0
          %409 = vmatpush.msra.mxu0 0.0
          %410 = vmatpush.msra.mxu0 0.0
          %411 = vmatpush.msra.mxu0 0.0
          %412 = vmatpush.msra.mxu0 0.0
          %413 = vmatpush.msra.mxu0 0.0
          %414 = vmatpush.msra.mxu0 0.0
          %415 = vmatpush.msra.mxu0 0.0
          %416 = vmatpush.msra.mxu0 0.0
          %417 = vmatpush.msra.mxu0 0.0
          %418 = vmatpush.msra.mxu0 %v401
          %419 = vmatpush.msra.mxu0 %v400
          %420 = vmatpush.msra.mxu0 %v399
          %421 = vmatpush.msra.mxu0 %v398
          %422 = vmatmul.f32.gmra.mxu0 %v375
          %v423 = vpop.f32.mrf.mxu0
          %v424 = vadd.f32 %v404, %v423
          %425 = vdwg.mxu0
          %426 = vst.msk [vmem:[#allocation3] sm:$0xff] %vm373, %v424
        $region68: #{tpu_custom_call.1} parent=47 // pred_fallthru
          _
        %s427 = smul.u32 %s31, 8
        %s428 = scalar_lea.vmem %s313, %s427 [#allocation4]
        %v429 = vld [vmem:[%s428] sm:$0xff]
        %v430 = vld [vmem:[#allocation7] sm:$0xff]
        %v431 = vld [vmem:[#allocation7 + $0x8] sm:$0xff]
        %v432 = vld [vmem:[#allocation7 + $0x10] sm:$0xff]
        %v433 = vld [vmem:[#allocation7 + $0x18] sm:$0xff]
        %v434 = vld [vmem:[%s4] sm:$0x1]
        %v436 = vperm.slane %v434, 0
        %vm438 = vcmask 261120
        %v440 = vsel %vm438, %v429, 0
        %442 = vmatpush.msra.mxu0 0.0
        %443 = vmatpush.msra.mxu0 0.0
        %444 = vmatpush.msra.mxu0 0.0
        %445 = vmatpush.msra.mxu0 0.0
        %446 = vmatpush.msra.mxu0 0.0
        %447 = vmatpush.msra.mxu0 0.0
        %448 = vmatpush.msra.mxu0 0.0
        %449 = vmatpush.msra.mxu0 0.0
        %450 = vmatpush.msra.mxu0 0.0
        %451 = vmatpush.msra.mxu0 0.0
        %452 = vmatpush.msra.mxu0 0.0
        %453 = vmatpush.msra.mxu0 0.0
        %454 = vmatpush.msra.mxu0 %v433
        %455 = vmatpush.msra.mxu0 %v432
        %456 = vmatpush.msra.mxu0 %v431
        %457 = vmatpush.msra.mxu0 %v430
        %458 = vmatmul.f32.gmra.mxu0 %v440
        %v459 = vpop.f32.mrf.mxu0
        %v460 = vadd.f32 %v436, %v459
        %461 = vdwg.mxu0
        %v462 = vld [vmem:[#allocation2] sm:$0xff]
        %v464 = vsel %vm438, %v460, 0
        %v467 = vsel %vm438, %v462, 0
        %469 = vmatpush.xpose.msra.mxu0 0.0
        %470 = vmatpush.xpose.msra.mxu0 0.0
        %471 = vmatpush.xpose.msra.mxu0 0.0
        %472 = vmatpush.xpose.msra.mxu0 0.0
        %473 = vmatpush.xpose.msra.mxu0 0.0
        %474 = vmatpush.xpose.msra.mxu0 0.0
        %475 = vmatpush.xpose.msra.mxu0 0.0
        %476 = vmatpush.xpose.msra.mxu0 0.0
        %477 = vmatpush.xpose.msra.mxu0 0.0
        %478 = vmatpush.xpose.msra.mxu0 0.0
        %479 = vmatpush.xpose.msra.mxu0 0.0
        %480 = vmatpush.xpose.msra.mxu0 0.0
        %481 = vmatpush.xpose.msra.mxu0 0.0
        %482 = vmatpush.xpose.msra.mxu0 0.0
        %483 = vmatpush.xpose.msra.mxu0 0.0
        %484 = vmatpush.xpose.msra.mxu0 %v467
        %485 = vmatmul.f32.gmra.mxu0 %v464
        %v486 = vpop.f32.mrf.mxu0
        %v487 = vadd.f32 0.0, %v486
        %488 = vdwg.mxu0
        %vm489 = vcmask 64512
        %v490 = vsel %vm489, %v487, -inf
        %491 = vmax.xlane.f32.xlu0 %v490
        %v492 = vpop.xlane.xlu0 %491
        %v493 = vsub.f32 %v487, %v492
        %v494 = vmul.f32 %v493, 1.442695
        %v495 = vpow.pop %v494
        %v496 = vsel %vm489, %v495, 0.0
        %497 = vadd.xlane.f32.xlu0 %v496
        %v498 = vpop.xlane.xlu0 %497
        %v499 = vrcp.pop %v498
        %v500 = vmul.f32 %v498, %v499
        %v501 = vsub.f32 1.0, %v500
        %v502 = vmul.f32 %v499, %v501
        %v503 = vadd.f32 %v499, %v502
        %vm504 = vweird.f32 %v498
        %vm505 = vweird.f32 %v499
        %vm506 = vmor %vm504, %vm505
        %v507 = vsel %vm506, %v499, %v503
        %v508 = vand.u32 2147483647, %v498
        %vm509 = vcmp.eq.f32.partialorder %v508, 8.507059e+37
        %v510 = vand.u32 %v498, 2147483648
        %v511 = vor.u32 1.1754944e-38, %v510
        %v512 = vsel %vm509, %v511, %v507
        %v513 = vmul.f32 %v495, %v512
        %v514 = vld [vmem:[#allocation3] sm:$0xff]
        %v516 = vsel %vm489, %v513, 0
        %518 = vmatpush.msra.mxu0 0.0
        %519 = vmatpush.msra.mxu0 0.0
        %520 = vmatpush.msra.mxu0 0.0
        %521 = vmatpush.msra.mxu0 0.0
        %522 = vmatpush.msra.mxu0 0.0
        %523 = vmatpush.msra.mxu0 0.0
        %524 = vmatpush.msra.mxu0 0.0
        %525 = vmatpush.msra.mxu0 0.0
        %526 = vmatpush.msra.mxu0 0.0
        %527 = vmatpush.msra.mxu0 0.0
        %528 = vmatpush.msra.mxu0 0.0
        %529 = vmatpush.msra.mxu0 0.0
        %530 = vmatpush.msra.mxu0 0.0
        %531 = vmatpush.msra.mxu0 0.0
        %532 = vmatpush.msra.mxu0 0.0
        %533 = vmatpush.msra.mxu0 %v514
        %534 = vmatmul.f32.gmra.mxu0 %v516
        %v535 = vpop.f32.mrf.mxu0
        %v536 = vadd.f32 0.0, %v535
        %537 = vdwg.mxu0
        %538 = vst.msk [vmem:[%s359] sm:$0xff] %vm438, %v536
        %s539 = sand.u32 %s200, 1
        %s540 = scalar_lea.sflag [#allocation6], %s539
        %s541 = sand.u32 %s200, 1
        %s542 = smul.addr %s541, 8
        %s543 = scalar_lea.vmem [#allocation12], %s542
        // Predicated region
        $region69: #{tpu_custom_call.1} parent=47 // pred_check
          %p544 = pneg %p210
        $region70: #{tpu_custom_call.1} parent=47 // pred_check_branch
          %546 = sbr.rel (%p544) target = $region72
        $region71: #{tpu_custom_call.1} parent=47 // pred_region
          %548 = vsyncadd %s540, 0
          %s549 = sadd.s32 %s31, %s30
          %s550 = smul.addr %s549, 8
          %s551 = scalar_lea.hbm %s7, %s550
          %s553 = sshll.u32 %s543, 4
          %s554 = int_to_ptr.vmem [resolvable:$true] %s553
          %s555 = sshll.u32 %s551, 4
          %s556 = int_to_ptr.hbm [resolvable:$true] %s555
          %558 = dma.vmem_to_hbm [thread:$0]  %s554, 128, %s556, %s540
        $region72: #{tpu_custom_call.1} parent=47 // pred_fallthru
          _
      $region48: #{tpu_custom_call.1} parent=5 // pred_fallthru
        _
      %p559 = scmp.le.s32.totalorder 2, %s21
      // Predicated region
      $region73: #{tpu_custom_call.1} parent=5 // pred_check
        %p560 = pneg %p559
      $region74: #{tpu_custom_call.1} parent=5 // pred_check_branch
        %562 = sbr.rel (%p560) target = $region76
      $region75: #{tpu_custom_call.1} parent=5 // pred_region
        %s563 = ssub.s32 %s21, 2
        // Predicated region
        $region77: #{tpu_custom_call.1} parent=75 // pred_check
          %p564 = pneg %p216
        $region78: #{tpu_custom_call.1} parent=75 // pred_check_branch
          %566 = sbr.rel (%p564) target = $region80
        $region79: #{tpu_custom_call.1} parent=75 // pred_region
          %s567 = sand.u32 %s201, 1
          %s568 = scalar_lea.sflag [#allocation6], %s567
          %s569 = sand.u32 %s201, 1
          %s570 = smul.addr %s569, 8
          %s571 = scalar_lea.vmem [#allocation12], %s570
          %573 = dma.done %s568, 128
        $region80: #{tpu_custom_call.1} parent=75 // pred_fallthru
          _
      $region76: #{tpu_custom_call.1} parent=5 // pred_fallthru
        _
    $region6: #{tpu_custom_call.1} parent=1 // loop_footer
      %s25 = sadd.s32 1, %s21
    $region7: #{tpu_custom_call.1} parent=1 // loop_footer_branch
      %20 = sbr.rel target = $region3
    $region8: #{tpu_custom_call.1} parent=1 // loop_exit
      _
    %574 = vsyncpa [#allocation5], 1
    %s575 = scalar_lea.sflag [#allocation5], 1
    %576 = vsyncpa %s575, 1
    %577 = vsyncpa [#allocation8], 1
    %578 = vsyncpa [#allocation11], 1
    %579 = vsyncpa [#allocation6], 1
    %s580 = scalar_lea.sflag [#allocation6], 1
    %581 = vsyncpa %s580, 1

</llo_original>
